<compile_context>
chip_gen: v5e
topology: v5e:2x2
jax: 0.10.0
libtpu: 0.0.40
codegen_flags: <defaults>
</compile_context>

<pallas_src>
import functools

import jax
import jax.numpy as jnp
from jax.experimental import pallas as pl
from jax.experimental.pallas import tpu as pltpu


def _round_up(x, m):
    return ((x + m - 1) // m) * m


def _cdiv(a, b):
    return (a + b - 1) // b


def adapter_layer_kernel(x_ref, wd_ref, bd_ref, wu_ref, params_ref, o_ref, *,
                         eps, non_linearity):
    """One token-tile of the fused Adapter + residual + LayerNorm.

    x_ref      : [TM, D]      token tile (native dtype)
    wd_ref     : [D, Bn_pad]  down projection (pre-transposed vs. torch Linear)
    bd_ref     : [1, Bn_pad]  f32
    wu_ref     : [Bn_pad, D]  up projection (pre-transposed vs. torch Linear)
    params_ref : [3, D]       f32 rows = (up bias, LN gamma, LN beta)
    o_ref      : [TM, D]
    """
    x = x_ref[...]
    xf = x.astype(jnp.float32)            # residual / LayerNorm path in f32
    xm = x.astype(wd_ref.dtype)           # MXU operand (bf16 when enabled)

    # down projection + bias + non-linearity (f32 accumulation on the MXU)
    down = jnp.dot(xm, wd_ref[...], preferred_element_type=jnp.float32)
    down = down + bd_ref[...]
    if non_linearity == "relu":
        act = jnp.maximum(down, 0.0)
    else:  # 'gelu' — exact erf form, matching torch.nn.GELU()
        act = jax.nn.gelu(down, approximate=False)

    # up projection + residual (+ up bias) in f32
    up = jnp.dot(act.astype(wu_ref.dtype), wu_ref[...],
                 preferred_element_type=jnp.float32)
    res = xf + up + params_ref[0:1, :]

    # LayerNorm: single-pass mean / E[x^2], gamma folded into the rsqrt scale.
    inv_d = 1.0 / res.shape[-1]
    mean = jnp.sum(res, axis=-1, keepdims=True) * inv_d
    meansq = jnp.sum(res * res, axis=-1, keepdims=True) * inv_d
    var = jnp.maximum(meansq - mean * mean, 0.0)
    scale = jax.lax.rsqrt(var + eps) * params_ref[1:2, :]       # inv * gamma
    out = (res - mean) * scale + params_ref[2:3, :]             # + beta
    o_ref[...] = out.astype(o_ref.dtype)


def _select_tile(T, D, x_itemsize, weight_bytes):
    """Pick the token-tile size tm (rows)."""
    # sublane packing granule for the streamed x/out tiles
    granule = {4: 8, 2: 16, 1: 32}.get(x_itemsize, 8)
    # conservative VMEM budget so the same tiling fits v7x's 64 MiB physical VMEM
    budget = 36 << 20
    # per token row: double-buffered in + out streams + ~4 rows of f32 LN/matmul temps
    per_row = D * (4 * x_itemsize + 4 * 4)
    tm = max(granule, (budget - weight_bytes) // per_row)
    tm = min(int(tm), 1024)
    if tm >= 256:
        tm = (tm // 256) * 256            # MXU-friendly multiple
    else:
        tm = max(granule, (tm // granule) * granule)
    # never make the block taller than the (rounded-up) token count
    tm = min(tm, _round_up(T, granule))
    # keep >= 2 grid steps so both v7x TensorCores get work
    if _cdiv(T, tm) < 2 and T > granule:
        tm = max(granule, _round_up(_cdiv(T, 2), granule))
    return tm


def adapter_layer(x, wd, bd, wu, bu, gamma, beta, eps, *,
                  non_linearity="relu", prefer_bf16_matmul=True):
    """x: [B, S, D]. wd: [D, Bn], wu: [Bn, D] (pre-transposed vs. torch Linear).
    Returns [B, S, D]."""
    B, S, D = x.shape
    Bn = wd.shape[1]
    T = B * S
    x2 = x.reshape(T, D)                  # no HBM pad of the token stream

    # matmul operand dtype: bf16 (MXU-native) with f32 accumulation
    mm_dtype = jnp.bfloat16 if prefer_bf16_matmul else x.dtype

    # zero-pad the bottleneck dim to a lane-dense multiple of 128 (exact math)
    Bn_pad = _round_up(Bn, 128)
    wd_p = wd.astype(mm_dtype)
    wu_p = wu.astype(mm_dtype)
    bd_p = bd.astype(jnp.float32)
    if Bn_pad != Bn:
        wd_p = jnp.pad(wd_p, ((0, 0), (0, Bn_pad - Bn)))
        wu_p = jnp.pad(wu_p, ((0, Bn_pad - Bn), (0, 0)))
        bd_p = jnp.pad(bd_p, ((0, Bn_pad - Bn),))
    bd_p = bd_p.reshape(1, Bn_pad)
    # bu / gamma / beta pre-cast to f32 and packed into one resident array
    params = jnp.stack([bu, gamma, beta]).astype(jnp.float32)   # [3, D]

    x_itemsize = jnp.dtype(x.dtype).itemsize
    w_itemsize = jnp.dtype(mm_dtype).itemsize
    # double-buffered resident operands
    weight_bytes = 2 * (2 * D * Bn_pad * w_itemsize + Bn_pad * 4 + 3 * D * 4)

    tm = _select_tile(T, D, x_itemsize, weight_bytes)
    grid = (_cdiv(T, tm),)                # ragged last tile masked by Pallas

    stream_bytes = 4 * tm * D * x_itemsize            # in + out, double-buffered
    temp_bytes = 4 * tm * D * 4                        # f32 LN / matmul temps
    vmem_limit = int(min(max(stream_bytes + weight_bytes + temp_bytes + (4 << 20),
                             32 << 20), 64 << 20))

    kernel = functools.partial(adapter_layer_kernel, eps=float(eps),
                               non_linearity=non_linearity)

    # Advisory cost hint for the XLA scheduler.
    flops = 4 * T * D * Bn_pad + 12 * T * D
    bytes_accessed = int(2 * T * D * x_itemsize
                         + 2 * D * Bn_pad * w_itemsize
                         + (Bn_pad + 3 * D) * 4)
    cost = pl.CostEstimate(flops=flops, transcendentals=T,
                           bytes_accessed=bytes_accessed)

    out = pl.pallas_call(
        kernel,
        out_shape=jax.ShapeDtypeStruct((T, D), x.dtype),
        grid_spec=pltpu.PrefetchScalarGridSpec(
            num_scalar_prefetch=0,
            grid=grid,
            in_specs=[
                pl.BlockSpec((tm, D), lambda i: (i, 0)),        # x: streamed tiles
                pl.BlockSpec((D, Bn_pad), lambda i: (0, 0)),    # wd: resident
                pl.BlockSpec((1, Bn_pad), lambda i: (0, 0)),    # bd: resident
                pl.BlockSpec((Bn_pad, D), lambda i: (0, 0)),    # wu: resident
                pl.BlockSpec((3, D), lambda i: (0, 0)),         # bu/gamma/beta: resident
            ],
            out_specs=pl.BlockSpec((tm, D), lambda i: (i, 0)),
        ),
        compiler_params=pltpu.CompilerParams(
            dimension_semantics=("parallel",),
            vmem_limit_bytes=vmem_limit),
        cost_estimate=cost,
    )(x2, wd_p, bd_p, wu_p, params)

    return out.reshape(B, S, D)


def reference(x, wd, bd, wu, bu, gamma, beta, eps, mm_dtype=jnp.float32):
    """Pure-JAX reference; mm_dtype lets us match the kernel's matmul precision."""
    xm = x.astype(mm_dtype)
    down = jnp.dot(xm, wd.astype(mm_dtype),
                   preferred_element_type=jnp.float32) + bd
    act = jnp.maximum(down, 0.0)
    up = jnp.dot(act.astype(mm_dtype), wu.astype(mm_dtype),
                 preferred_element_type=jnp.float32) + bu
    res = x.astype(jnp.float32) + up
    mean = jnp.mean(res, axis=-1, keepdims=True)
    var = jnp.mean((res - mean) ** 2, axis=-1, keepdims=True)
    out = (res - mean) / jnp.sqrt(var + eps) * gamma + beta
    return out.astype(x.dtype)


if __name__ == "__main__":
    B, S, D, Bn = 2, 8, 32, 8
    eps = 1e-12
    init_range = 0.01

    key = jax.random.PRNGKey(0)
    kx, kwd, kwu, kbd, kbu, kg, kb = jax.random.split(key, 7)

    x = jax.random.normal(kx, (B, S, D), dtype=jnp.float32)

    # torch Linear stores weight as [out, in]; we pre-transpose to [in, out]
    wd = (init_range * jax.random.normal(kwd, (Bn, D), dtype=jnp.float32)).T  # [D, Bn]
    wu = (init_range * jax.random.normal(kwu, (D, Bn), dtype=jnp.float32)).T  # [Bn, D]
    # non-zero params to exercise every path (module inits them to 0/1; forward
    # semantics are identical for arbitrary trained values)
    bd = 0.01 * jax.random.normal(kbd, (Bn,), dtype=jnp.float32)
    bu = 0.01 * jax.random.normal(kbu, (D,), dtype=jnp.float32)
    gamma = 1.0 + 0.1 * jax.random.normal(kg, (D,), dtype=jnp.float32)
    beta = 0.05 * jax.random.normal(kb, (D,), dtype=jnp.float32)

    out = adapter_layer(x, wd, bd, wu, bu, gamma, beta, eps)
    out = jax.block_until_ready(out)
    assert out.shape == (B, S, D)

    # precision-matched reference (bf16 matmul operands, f32 accumulation)
    ref_matched = reference(x, wd, bd, wu, bu, gamma, beta, eps,
                            mm_dtype=jnp.bfloat16)
    assert jnp.allclose(out, ref_matched, atol=5e-5, rtol=5e-5), \
        "mismatch vs precision-matched reference"

    # full-f32 reference (bf16 matmul rounding bounded by adapter's small scale)
    ref_f32 = reference(x, wd, bd, wu, bu, gamma, beta, eps,
                        mm_dtype=jnp.float32)
    assert jnp.allclose(out, ref_f32, atol=2e-3, rtol=2e-3), \
        "mismatch vs f32 reference"

    print("KERNEL_OK")
</pallas_src>

<mosaic_0001>
module attributes {stable_mosaic.version = 11 : i64} {
  func.func @adapter_layer_kernel(%arg0: i32, %arg1: memref<8x32xf32, #tpu.memory_space<vmem>>, %arg2: memref<32x128xbf16, #tpu.memory_space<vmem>>, %arg3: memref<1x128xf32, #tpu.memory_space<vmem>>, %arg4: memref<128x32xbf16, #tpu.memory_space<vmem>>, %arg5: memref<3x32xf32, #tpu.memory_space<vmem>>, %arg6: memref<8x32xf32, #tpu.memory_space<vmem>>) attributes {dimension_semantics = [#tpu.dimension_semantics<parallel>], iteration_bounds = array<i64: 2>, scalar_prefetch = 0 : i64, scratch_operands = 0 : i64, tpu.core_type = #tpu.core_type<tc>, window_params = [{transform_indices = @transform_0, window_bounds = array<i64: 8, 32>}, {pipeline_mode = #tpu.pipeline_mode<synchronous>, transform_indices = @transform_1, window_bounds = array<i64: 32, 128>}, {pipeline_mode = #tpu.pipeline_mode<synchronous>, transform_indices = @transform_2, window_bounds = array<i64: 1, 128>}, {pipeline_mode = #tpu.pipeline_mode<synchronous>, transform_indices = @transform_3, window_bounds = array<i64: 128, 32>}, {pipeline_mode = #tpu.pipeline_mode<synchronous>, transform_indices = @transform_4, window_bounds = array<i64: 3, 32>}, {transform_indices = @transform_5, window_bounds = array<i64: 8, 32>}]} {
    %c0 = arith.constant 0 : index
    %c0_0 = arith.constant 0 : index
    %0 = vector.load %arg1[%c0, %c0_0] : memref<8x32xf32, #tpu.memory_space<vmem>>, vector<8x32xf32>
    %1 = arith.truncf %0 : vector<8x32xf32> to vector<8x32xbf16>
    %c0_1 = arith.constant 0 : index
    %c0_2 = arith.constant 0 : index
    %2 = vector.load %arg2[%c0_1, %c0_2] : memref<32x128xbf16, #tpu.memory_space<vmem>>, vector<32x128xbf16>
    %cst = arith.constant dense<0.000000e+00> : vector<8x128xf32>
    %3 = tpu.matmul %1, %2, %cst {dimension_numbers = #tpu.dot_dimension_numbers<[1], [0], [0], [1], [0, 0, 1, 1], [], []>} : vector<8x32xbf16>, vector<32x128xbf16>, vector<8x128xf32> -> vector<8x128xf32>
    %c0_3 = arith.constant 0 : index
    %c0_4 = arith.constant 0 : index
    %4 = vector.load %arg3[%c0_3, %c0_4] : memref<1x128xf32, #tpu.memory_space<vmem>>, vector<1x128xf32>
    %5 = vector.broadcast %4 : vector<1x128xf32> to vector<8x128xf32>
    %6 = arith.addf %3, %5 : vector<8x128xf32>
    %cst_5 = arith.constant 0.000000e+00 : f32
    %7 = vector.broadcast %cst_5 : f32 to vector<8x128xf32>
    %8 = arith.maximumf %6, %7 : vector<8x128xf32>
    %9 = arith.truncf %8 : vector<8x128xf32> to vector<8x128xbf16>
    %c0_6 = arith.constant 0 : index
    %c0_7 = arith.constant 0 : index
    %10 = vector.load %arg4[%c0_6, %c0_7] : memref<128x32xbf16, #tpu.memory_space<vmem>>, vector<128x32xbf16>
    %cst_8 = arith.constant dense<0.000000e+00> : vector<8x32xf32>
    %11 = tpu.matmul %9, %10, %cst_8 {dimension_numbers = #tpu.dot_dimension_numbers<[1], [0], [0], [1], [0, 0, 1, 1], [], []>} : vector<8x128xbf16>, vector<128x32xbf16>, vector<8x32xf32> -> vector<8x32xf32>
    %12 = arith.addf %0, %11 : vector<8x32xf32>
    %c0_9 = arith.constant 0 : index
    %c0_10 = arith.constant 0 : index
    %13 = vector.load %arg5[%c0_9, %c0_10] : memref<3x32xf32, #tpu.memory_space<vmem>>, vector<1x32xf32>
    %14 = vector.broadcast %13 : vector<1x32xf32> to vector<8x32xf32>
    %15 = arith.addf %12, %14 : vector<8x32xf32>
    %cst_11 = arith.constant dense<0.000000e+00> : vector<8xf32>
    %16 = vector.multi_reduction <add>, %15, %cst_11 [1] : vector<8x32xf32> to vector<8xf32>
    %17 = vector.shape_cast %16 : vector<8xf32> to vector<8x1xf32>
    %cst_12 = arith.constant 3.125000e-02 : f32
    %18 = vector.broadcast %cst_12 : f32 to vector<8x1xf32>
    %19 = arith.mulf %17, %18 : vector<8x1xf32>
    %20 = arith.mulf %15, %15 : vector<8x32xf32>
    %cst_13 = arith.constant dense<0.000000e+00> : vector<8xf32>
    %21 = vector.multi_reduction <add>, %20, %cst_13 [1] : vector<8x32xf32> to vector<8xf32>
    %22 = vector.shape_cast %21 : vector<8xf32> to vector<8x1xf32>
    %cst_14 = arith.constant 3.125000e-02 : f32
    %23 = vector.broadcast %cst_14 : f32 to vector<8x1xf32>
    %24 = arith.mulf %22, %23 : vector<8x1xf32>
    %25 = arith.mulf %19, %19 : vector<8x1xf32>
    %26 = arith.subf %24, %25 : vector<8x1xf32>
    %cst_15 = arith.constant 0.000000e+00 : f32
    %27 = vector.broadcast %cst_15 : f32 to vector<8x1xf32>
    %28 = arith.maximumf %26, %27 : vector<8x1xf32>
    %cst_16 = arith.constant 9.99999996E-13 : f32
    %29 = vector.broadcast %cst_16 : f32 to vector<8x1xf32>
    %30 = arith.addf %28, %29 : vector<8x1xf32>
    %31 = math.rsqrt %30 : vector<8x1xf32>
    %c1 = arith.constant 1 : index
    %c0_17 = arith.constant 0 : index
    %32 = vector.load %arg5[%c1, %c0_17] : memref<3x32xf32, #tpu.memory_space<vmem>>, vector<1x32xf32>
    %33 = vector.broadcast %31 : vector<8x1xf32> to vector<8x32xf32>
    %34 = vector.broadcast %32 : vector<1x32xf32> to vector<8x32xf32>
    %35 = arith.mulf %33, %34 : vector<8x32xf32>
    %36 = vector.broadcast %19 : vector<8x1xf32> to vector<8x32xf32>
    %37 = arith.subf %15, %36 : vector<8x32xf32>
    %38 = arith.mulf %37, %35 : vector<8x32xf32>
    %c2 = arith.constant 2 : index
    %c0_18 = arith.constant 0 : index
    %39 = vector.load %arg5[%c2, %c0_18] : memref<3x32xf32, #tpu.memory_space<vmem>>, vector<1x32xf32>
    %40 = vector.broadcast %39 : vector<1x32xf32> to vector<8x32xf32>
    %41 = arith.addf %38, %40 : vector<8x32xf32>
    %c0_19 = arith.constant 0 : index
    %c0_20 = arith.constant 0 : index
    %42 = vector.load %arg6[%c0_19, %c0_20] : memref<8x32xf32, #tpu.memory_space<vmem>>, vector<8x32xf32>
    tpu.vector_store %arg6[%c0_19, %c0_20], %41 {strides = array<i32>} : memref<8x32xf32, #tpu.memory_space<vmem>>, vector<8x32xf32>,
    return
  }
  func.func @transform_0(%arg0: i32) -> (i32, i32) {
    %c0_i32 = arith.constant 0 : i32
    %c0_i32_0 = arith.constant 0 : i32
    return %arg0, %c0_i32 : i32, i32
  }
  func.func @transform_1(%arg0: i32) -> (i32, i32) {
    %c0_i32 = arith.constant 0 : i32
    %c0_i32_0 = arith.constant 0 : i32
    %c0_i32_1 = arith.constant 0 : i32
    return %c0_i32, %c0_i32_0 : i32, i32
  }
  func.func @transform_2(%arg0: i32) -> (i32, i32) {
    %c0_i32 = arith.constant 0 : i32
    %c0_i32_0 = arith.constant 0 : i32
    %c0_i32_1 = arith.constant 0 : i32
    return %c0_i32, %c0_i32_0 : i32, i32
  }
  func.func @transform_3(%arg0: i32) -> (i32, i32) {
    %c0_i32 = arith.constant 0 : i32
    %c0_i32_0 = arith.constant 0 : i32
    %c0_i32_1 = arith.constant 0 : i32
    return %c0_i32, %c0_i32_0 : i32, i32
  }
  func.func @transform_4(%arg0: i32) -> (i32, i32) {
    %c0_i32 = arith.constant 0 : i32
    %c0_i32_0 = arith.constant 0 : i32
    %c0_i32_1 = arith.constant 0 : i32
    return %c0_i32, %c0_i32_0 : i32, i32
  }
  func.func @transform_5(%arg0: i32) -> (i32, i32) {
    %c0_i32 = arith.constant 0 : i32
    %c0_i32_0 = arith.constant 0 : i32
    return %arg0, %c0_i32 : i32, i32
  }
}

</mosaic_0001>

<llo_original>
// kernel: tpu_custom_call.1
$region0: #{tpu_custom_call.1}
  #allocation0 [shape = 'u32[]', space=smem, size = 0x4, offset = 0x4, fixed_abs, tag = 'smem constant byte address 0x4 - core index']
  #allocation1 [shape = 'u32[72,128]{1,0:T(1,128)}', space=vmem, size = 0x9000, scoped, tag = 'internal scratch']
  %s0 = inlined_call_operand.vmem [shape: f32[16,32], index: 0, kind: input, shape index: {}]
  %s1 = inlined_call_operand.vmem [shape: bf16[32,128], index: 1, kind: input, shape index: {}]
  %s2 = inlined_call_operand.vmem [shape: f32[1,128], index: 2, kind: input, shape index: {}]
  %s3 = inlined_call_operand.vmem [shape: bf16[128,32], index: 3, kind: input, shape index: {}]
  %s4 = inlined_call_operand.vmem [shape: f32[3,32], index: 4, kind: input, shape index: {}]
  %s5 = inlined_call_operand.hbm [shape: f32[16,32], index: 5, kind: output, shape index: {}]
  %s6 = sld [smem:[#allocation0]]
  $region53: #{tpu_custom_call.1} parent=0
    _
  %s8 = ssub.s32 1, %s6
  %s9 = scalar_select 0, %s8, %s6
  $region1: #{tpu_custom_call.1} parent=0
    #allocation2 [shape = 'u8[8192]{0}', space=vmem, size = 0x2000, scoped, tag = 'output window, operand 0']
    #allocation3 [shape = 's32[2]{0}', space=sflag, size = 0x8, scoped, tag = 'scoped memory for tpu_custom_call.1']
    %10 = vsyncpa [#allocation3], 0
    %s11 = scalar_lea.sflag [#allocation3], 1
    %12 = vsyncpa %s11, 0
    loop: start=0, step=1, limit=4
    $region2: #{tpu_custom_call.1} parent=1 // loop_pre_header
      _
    $region3: #{tpu_custom_call.1} parent=1 // loop_header
      %s14 = sphi 0, %s18
      %p15 = scmp.ge.s32.totalorder %s14, 4
      %s24 = sphi 0, %s26
      %s27 = sphi 0, %s24
      %s28 = sphi 0, %s27
      %s44 = sphi 0, %s28
      %s48 = sphi 0, %s48
      %s50 = sphi 0, %s48
      %s51 = sphi 0, %s50
      %s65 = sphi 0, %s51
      %s69 = sphi 0, %s69
      %s71 = sphi 0, %s69
      %s72 = sphi 0, %s71
      %s86 = sphi 0, %s72
      %s90 = sphi 0, %s90
      %s92 = sphi 0, %s90
      %s93 = sphi 0, %s92
      %s107 = sphi 0, %s93
      %s111 = sphi 0, %s111
      %s113 = sphi 0, %s111
      %s114 = sphi 0, %s113
      %s128 = sphi 0, %s114
      %s134 = sphi 0, %s136
      %s137 = sphi 0, %s134
      %s138 = sphi 0, %s137
      %s154 = sphi 0, %s138
    $region4: #{tpu_custom_call.1} parent=1 // loop_header_branch
      %17 = sbr.rel (%p15) target = $region8
    $region5: #{tpu_custom_call.1} parent=1 // loop_body
      %s19 = ssub.s32 %s14, 1
      %s20 = ssub.s32 %s14, 2
      %s21 = sadd.s32 %s14, 1
      %s22 = ssub.s32 %s14, %s21
      %p23 = scmp.eq.s32.totalorder %s22, 0
      %s25 = sadd.s32 %s24, 1
      %s26 = scalar_select %p23, %s24, %s25
      %p29 = pneg %p23
      %p30 = scmp.eq.s32.totalorder %s14, 1
      %p31 = por %p29, %p30
      %p32 = scmp.ne.s32.totalorder %s24, %s27
      %p33 = scmp.eq.s32.totalorder %s14, 0
      %p34 = por %p32, %p33
      %p35 = scmp.ne.s32.totalorder %s24, %s27
      %p36 = scmp.eq.s32.totalorder %s19, 1
      %p37 = por %p35, %p36
      %p38 = scmp.ne.s32.totalorder %s27, %s28
      %p39 = scmp.eq.s32.totalorder %s19, 0
      %p40 = por %p38, %p39
      %p41 = scmp.ne.s32.totalorder %s27, %s28
      %p42 = scmp.eq.s32.totalorder %s20, 1
      %p43 = por %p41, %p42
      %p45 = scmp.ne.s32.totalorder %s28, %s44
      %p46 = scmp.eq.s32.totalorder %s20, 0
      %p47 = por %p45, %p46
      %s49 = sadd.s32 %s48, 1
      %p52 = scmp.eq.s32.totalorder %s14, 1
      %p53 = scmp.ne.s32.totalorder %s48, %s50
      %p54 = scmp.eq.s32.totalorder %s14, 0
      %p55 = por %p53, %p54
      %p56 = scmp.ne.s32.totalorder %s48, %s50
      %p57 = scmp.eq.s32.totalorder %s19, 1
      %p58 = por %p56, %p57
      %p59 = scmp.ne.s32.totalorder %s50, %s51
      %p60 = scmp.eq.s32.totalorder %s19, 0
      %p61 = por %p59, %p60
      %p62 = scmp.ne.s32.totalorder %s50, %s51
      %p63 = scmp.eq.s32.totalorder %s20, 1
      %p64 = por %p62, %p63
      %p66 = scmp.ne.s32.totalorder %s51, %s65
      %p67 = scmp.eq.s32.totalorder %s20, 0
      %p68 = por %p66, %p67
      %s70 = sadd.s32 %s69, 1
      %p73 = scmp.eq.s32.totalorder %s14, 1
      %p74 = scmp.ne.s32.totalorder %s69, %s71
      %p75 = scmp.eq.s32.totalorder %s14, 0
      %p76 = por %p74, %p75
      %p77 = scmp.ne.s32.totalorder %s69, %s71
      %p78 = scmp.eq.s32.totalorder %s19, 1
      %p79 = por %p77, %p78
      %p80 = scmp.ne.s32.totalorder %s71, %s72
      %p81 = scmp.eq.s32.totalorder %s19, 0
      %p82 = por %p80, %p81
      %p83 = scmp.ne.s32.totalorder %s71, %s72
      %p84 = scmp.eq.s32.totalorder %s20, 1
      %p85 = por %p83, %p84
      %p87 = scmp.ne.s32.totalorder %s72, %s86
      %p88 = scmp.eq.s32.totalorder %s20, 0
      %p89 = por %p87, %p88
      %s91 = sadd.s32 %s90, 1
      %p94 = scmp.eq.s32.totalorder %s14, 1
      %p95 = scmp.ne.s32.totalorder %s90, %s92
      %p96 = scmp.eq.s32.totalorder %s14, 0
      %p97 = por %p95, %p96
      %p98 = scmp.ne.s32.totalorder %s90, %s92
      %p99 = scmp.eq.s32.totalorder %s19, 1
      %p100 = por %p98, %p99
      %p101 = scmp.ne.s32.totalorder %s92, %s93
      %p102 = scmp.eq.s32.totalorder %s19, 0
      %p103 = por %p101, %p102
      %p104 = scmp.ne.s32.totalorder %s92, %s93
      %p105 = scmp.eq.s32.totalorder %s20, 1
      %p106 = por %p104, %p105
      %p108 = scmp.ne.s32.totalorder %s93, %s107
      %p109 = scmp.eq.s32.totalorder %s20, 0
      %p110 = por %p108, %p109
      %s112 = sadd.s32 %s111, 1
      %p115 = scmp.eq.s32.totalorder %s14, 1
      %p116 = scmp.ne.s32.totalorder %s111, %s113
      %p117 = scmp.eq.s32.totalorder %s14, 0
      %p118 = por %p116, %p117
      %p119 = scmp.ne.s32.totalorder %s111, %s113
      %p120 = scmp.eq.s32.totalorder %s19, 1
      %p121 = por %p119, %p120
      %p122 = scmp.ne.s32.totalorder %s113, %s114
      %p123 = scmp.eq.s32.totalorder %s19, 0
      %p124 = por %p122, %p123
      %p125 = scmp.ne.s32.totalorder %s113, %s114
      %p126 = scmp.eq.s32.totalorder %s20, 1
      %p127 = por %p125, %p126
      %p129 = scmp.ne.s32.totalorder %s114, %s128
      %p130 = scmp.eq.s32.totalorder %s20, 0
      %p131 = por %p129, %p130
      %s132 = ssub.s32 %s14, %s21
      %p133 = scmp.eq.s32.totalorder %s132, 0
      %s135 = sadd.s32 %s134, 1
      %s136 = scalar_select %p133, %s134, %s135
      %p139 = pneg %p133
      %p140 = scmp.eq.s32.totalorder %s14, 1
      %p141 = por %p139, %p140
      %p142 = scmp.ne.s32.totalorder %s134, %s137
      %p143 = scmp.eq.s32.totalorder %s14, 0
      %p144 = por %p142, %p143
      %p145 = scmp.ne.s32.totalorder %s134, %s137
      %p146 = scmp.eq.s32.totalorder %s19, 1
      %p147 = por %p145, %p146
      %p148 = scmp.ne.s32.totalorder %s137, %s138
      %p149 = scmp.eq.s32.totalorder %s19, 0
      %p150 = por %p148, %p149
      %p151 = scmp.ne.s32.totalorder %s137, %s138
      %p152 = scmp.eq.s32.totalorder %s20, 1
      %p153 = por %p151, %p152
      %p155 = scmp.ne.s32.totalorder %s138, %s154
      %p156 = scmp.eq.s32.totalorder %s20, 0
      %p157 = por %p155, %p156
      %p158 = scmp.le.s32.totalorder 1, %s14
      %p159 = scmp.lt.s32.totalorder %s14, 3
      %p160 = pnand %p158, %p159
      %p161 = pneg %p160
      // Predicated region
      $region9: #{tpu_custom_call.1} parent=5 // pred_check
        _
      $region10: #{tpu_custom_call.1} parent=5 // pred_check_branch
        %163 = sbr.rel (%p160) target = $region12
      $region11: #{tpu_custom_call.1} parent=5 // pred_region
        %s164 = ssub.s32 %s14, 1
        // Predicated region
        $region13: #{tpu_custom_call.1} parent=11 // pred_check
          %p165 = pneg %p61
        $region14: #{tpu_custom_call.1} parent=11 // pred_check_branch
          %167 = sbr.rel (%p165) target = $region16
        $region15: #{tpu_custom_call.1} parent=11 // pred_region
          _
        $region16: #{tpu_custom_call.1} parent=11 // pred_fallthru
          _
        // Predicated region
        $region17: #{tpu_custom_call.1} parent=11 // pred_check
          %p168 = pneg %p82
        $region18: #{tpu_custom_call.1} parent=11 // pred_check_branch
          %170 = sbr.rel (%p168) target = $region20
        $region19: #{tpu_custom_call.1} parent=11 // pred_region
          _
        $region20: #{tpu_custom_call.1} parent=11 // pred_fallthru
          _
        // Predicated region
        $region21: #{tpu_custom_call.1} parent=11 // pred_check
          %p171 = pneg %p103
        $region22: #{tpu_custom_call.1} parent=11 // pred_check_branch
          %173 = sbr.rel (%p171) target = $region24
        $region23: #{tpu_custom_call.1} parent=11 // pred_region
          _
        $region24: #{tpu_custom_call.1} parent=11 // pred_fallthru
          _
        // Predicated region
        $region25: #{tpu_custom_call.1} parent=11 // pred_check
          %p174 = pneg %p124
        $region26: #{tpu_custom_call.1} parent=11 // pred_check_branch
          %176 = sbr.rel (%p174) target = $region28
        $region27: #{tpu_custom_call.1} parent=11 // pred_region
          _
        $region28: #{tpu_custom_call.1} parent=11 // pred_fallthru
          _
      $region12: #{tpu_custom_call.1} parent=5 // pred_fallthru
        _
      %p177 = scmp.lt.s32.totalorder %s14, 2
      // Predicated region
      $region29: #{tpu_custom_call.1} parent=5 // pred_check
        %p178 = pneg %p177
      $region30: #{tpu_custom_call.1} parent=5 // pred_check_branch
        %180 = sbr.rel (%p178) target = $region32
      $region31: #{tpu_custom_call.1} parent=5 // pred_region
        // Predicated region
        $region33: #{tpu_custom_call.1} parent=31 // pred_check
          %p181 = pneg %p34
        $region34: #{tpu_custom_call.1} parent=31 // pred_check_branch
          %183 = sbr.rel (%p181) target = $region36
        $region35: #{tpu_custom_call.1} parent=31 // pred_region
          %p184 = scmp.lt.s32.totalorder %s14, 1
          %s185 = scalar_select %p184, %s14, 1
          %s186 = smul.addr %s185, 8
          %s187 = scalar_lea.vmem %s0, %s186
        $region36: #{tpu_custom_call.1} parent=31 // pred_fallthru
          _
      $region32: #{tpu_custom_call.1} parent=5 // pred_fallthru
        _
      %p188 = scmp.le.s32.totalorder 1, %s14
      %p189 = scmp.lt.s32.totalorder %s14, 3
      %p190 = pnand %p188, %p189
      %p191 = pneg %p190
      // Predicated region
      $region37: #{tpu_custom_call.1} parent=5 // pred_check
        _
      $region38: #{tpu_custom_call.1} parent=5 // pred_check_branch
        %193 = sbr.rel (%p190) target = $region40
      $region39: #{tpu_custom_call.1} parent=5 // pred_region
        %s194 = ssub.s32 %s14, 1
        %p195 = scmp.lt.s32.totalorder %s19, 1
        %s196 = scalar_select %p195, %s19, 1
        %s197 = smul.addr %s196, 8
        %s198 = scalar_lea.vmem %s0, %s197
        %p199 = pneg %p40
        %p200 = pneg %p37
        %p201 = pneg %p61
        %p202 = pneg %p58
        %p203 = pneg %p82
        %p204 = pneg %p79
        %p205 = pneg %p103
        %p206 = pneg %p100
        %p207 = pneg %p124
        %p208 = pneg %p121
        %p209 = pneg %p150
        %p210 = pneg %p147
        %s211 = sand.u32 %s137, 1
        %s212 = scalar_lea.sflag [#allocation3], %s211
        %s213 = sand.u32 %s137, 1
        %s214 = smul.addr %s213, 8
        %s215 = scalar_lea.vmem [#allocation2], %s214
        %p216 = scmp.lt.s32.totalorder %s19, 1
        %s217 = scalar_select %p216, %s19, 1
        %s218 = smul.addr %s217, 8
        %s219 = scalar_lea.vmem %s0, %s218
        %v221 = vld [vmem:[%s219] sm:$0xff]
        %v222 = vpack.c.bf16 %v221, %v221
        %v223 = vld [vmem:[%s1] sm:$0xf]
        %v224 = vld [vmem:[%s1 + $0x4] sm:$0xf]
        %v225 = vld [vmem:[%s1 + $0x8] sm:$0xf]
        %v226 = vld [vmem:[%s1 + $0xc] sm:$0xf]
        %v227 = vld [vmem:[%s2] sm:$0x1]
        %v229 = vperm.slane %v227, 0
        %v235 = vunpack.c.l.b16 %v223
        %v236 = vunpack.c.l.b16 %v224
        %v237 = vunpack.c.l.b16 %v225
        %v238 = vunpack.c.l.b16 %v226
        %v239 = vpack.c.b16 %v236, %v235
        %v240 = vpack.c.b16 %v238, %v237
        %vm243 = vcmask 261120
        %v245 = vsel %vm243, %v222, 0
        %247 = vmatpush.bf16.msra.mxu0 0
        %248 = vmatpush.bf16.msra.mxu0 0
        %249 = vmatpush.bf16.msra.mxu0 0
        %250 = vmatpush.bf16.msra.mxu0 0
        %251 = vmatpush.bf16.msra.mxu0 0
        %252 = vmatpush.bf16.msra.mxu0 0
        %253 = vmatpush.bf16.msra.mxu0 %v240
        %254 = vmatpush.bf16.msra.mxu0 %v239
        %255 = vmatmul.bf16.gmra.mxu0 %v245
        %v256 = vpop.f32.mrf.mxu0
        %v257 = vadd.f32 %v229, %v256
        %v258 = vpop.f32.mrf.mxu0
        %259 = vdwg.mxu0
        %v260 = vmax.f32 %v257, 0.0
        %v261 = vpack.c.bf16 %v260, %v260
        %v262 = vld [vmem:[%s3] sm:$0xf]
        %v263 = vld [vmem:[%s3 + $0x4] sm:$0xf]
        %v264 = vld [vmem:[%s3 + $0x8] sm:$0xf]
        %v265 = vld [vmem:[%s3 + $0xc] sm:$0xf]
        %v266 = vld [vmem:[%s3 + $0x10] sm:$0xf]
        %v267 = vld [vmem:[%s3 + $0x14] sm:$0xf]
        %v268 = vld [vmem:[%s3 + $0x18] sm:$0xf]
        %v269 = vld [vmem:[%s3 + $0x1c] sm:$0xf]
        %v270 = vld [vmem:[%s3 + $0x20] sm:$0xf]
        %v271 = vld [vmem:[%s3 + $0x24] sm:$0xf]
        %v272 = vld [vmem:[%s3 + $0x28] sm:$0xf]
        %v273 = vld [vmem:[%s3 + $0x2c] sm:$0xf]
        %v274 = vld [vmem:[%s3 + $0x30] sm:$0xf]
        %v275 = vld [vmem:[%s3 + $0x34] sm:$0xf]
        %v276 = vld [vmem:[%s3 + $0x38] sm:$0xf]
        %v277 = vld [vmem:[%s3 + $0x3c] sm:$0xf]
        %v294 = vunpack.c.l.b16 %v262
        %v295 = vunpack.c.l.b16 %v263
        %v296 = vunpack.c.l.b16 %v264
        %v297 = vunpack.c.l.b16 %v265
        %v298 = vunpack.c.l.b16 %v266
        %v299 = vunpack.c.l.b16 %v267
        %v300 = vunpack.c.l.b16 %v268
        %v301 = vunpack.c.l.b16 %v269
        %v302 = vunpack.c.l.b16 %v270
        %v303 = vunpack.c.l.b16 %v271
        %v304 = vunpack.c.l.b16 %v272
        %v305 = vunpack.c.l.b16 %v273
        %v306 = vunpack.c.l.b16 %v274
        %v307 = vunpack.c.l.b16 %v275
        %v308 = vunpack.c.l.b16 %v276
        %v309 = vunpack.c.l.b16 %v277
        %v310 = vpack.c.b16 %v295, %v294
        %v311 = vpack.c.b16 %v297, %v296
        %v312 = vpack.c.b16 %v299, %v298
        %v313 = vpack.c.b16 %v301, %v300
        %v314 = vpack.c.b16 %v303, %v302
        %v315 = vpack.c.b16 %v305, %v304
        %v316 = vpack.c.b16 %v307, %v306
        %v317 = vpack.c.b16 %v309, %v308
        %326 = vmatpush.bf16.msra.mxu0 %v317
        %327 = vmatpush.bf16.msra.mxu0 %v316
        %328 = vmatpush.bf16.msra.mxu0 %v315
        %329 = vmatpush.bf16.msra.mxu0 %v314
        %330 = vmatpush.bf16.msra.mxu0 %v313
        %331 = vmatpush.bf16.msra.mxu0 %v312
        %332 = vmatpush.bf16.msra.mxu0 %v311
        %333 = vmatpush.bf16.msra.mxu0 %v310
        %334 = vmatmul.bf16.gmra.mxu0 %v261
        %v335 = vpop.f32.mrf.mxu0
        %v336 = vadd.f32 0.0, %v335
        %v337 = vpop.f32.mrf.mxu0
        %338 = vdwg.mxu0
        %v339 = vadd.f32 %v221, %v336
        %v340 = vld [vmem:[%s4] sm:$0x1]
        %v341 = vperm.slane %v340, 0
        %v342 = vadd.f32 %v339, %v341
        %v343 = vsel %vm243, %v342, 0.0
        %344 = vadd.xlane.f32.xlu0 %v343
        %v345 = vpop.xlane.xlu0 %344
        %v346 = vmul.f32 %v345, 0.03125
        %v347 = vmul.f32 %v342, %v342
        %v348 = vsel %vm243, %v347, 0.0
        %349 = vadd.xlane.f32.xlu0 %v348
        %v350 = vpop.xlane.xlu0 %349
        %v351 = vmul.f32 %v350, 0.03125
        %v352 = vmul.f32 %v346, %v346
        %v353 = vsub.f32 %v351, %v352
        %v354 = vmax.f32 %v353, 0.0
        %v355 = vadd.f32 %v354, 1e-12
        %v356 = vrsqrt.pop %v355
        %v357 = vmul.f32 %v356, %v355
        %v358 = vmul.f32 %v357, %v356
        %v359 = vmul.f32 0.5, %v358
        %v360 = vsub.f32 1.5, %v359
        %v361 = vmul.f32 %v356, %v360
        %vm362 = vweird.f32 %v355
        %vm363 = vweird.f32 %v356
        %vm364 = vmor %vm362, %vm363
        %v365 = vsel %vm364, %v356, %v361
        %v366 = vld [vmem:[%s4 + $0x1] sm:$0x1]
        %v367 = vperm.slane %v366, 0
        %v368 = vmul.f32 %v365, %v367
        %v369 = vsub.f32 %v342, %v346
        %v370 = vmul.f32 %v369, %v368
        %v371 = vld [vmem:[%s4 + $0x2] sm:$0x1]
        %v372 = vperm.slane %v371, 0
        %v373 = vadd.f32 %v370, %v372
        %374 = vst.msk [vmem:[%s215] sm:$0xff] %vm243, %v373
        %s375 = sand.u32 %s137, 1
        %s376 = scalar_lea.sflag [#allocation3], %s375
        %s377 = sand.u32 %s137, 1
        %s378 = smul.addr %s377, 8
        %s379 = scalar_lea.vmem [#allocation2], %s378
        // Predicated region
        $region41: #{tpu_custom_call.1} parent=39 // pred_check
          %p380 = pneg %p147
        $region42: #{tpu_custom_call.1} parent=39 // pred_check_branch
          %382 = sbr.rel (%p380) target = $region44
        $region43: #{tpu_custom_call.1} parent=39 // pred_region
          %384 = vsyncadd %s376, 0
          %s385 = smul.addr %s19, 8
          %s386 = scalar_lea.hbm %s5, %s385
          %s388 = sshll.u32 %s379, 4
          %s389 = int_to_ptr.vmem [resolvable:$true] %s388
          %s390 = sshll.u32 %s386, 4
          %s391 = int_to_ptr.hbm [resolvable:$true] %s390
          %393 = dma.vmem_to_hbm [thread:$0]  %s389, 128, %s391, %s376
        $region44: #{tpu_custom_call.1} parent=39 // pred_fallthru
          _
      $region40: #{tpu_custom_call.1} parent=5 // pred_fallthru
        _
      %p394 = scmp.le.s32.totalorder 2, %s14
      // Predicated region
      $region45: #{tpu_custom_call.1} parent=5 // pred_check
        %p395 = pneg %p394
      $region46: #{tpu_custom_call.1} parent=5 // pred_check_branch
        %397 = sbr.rel (%p395) target = $region48
      $region47: #{tpu_custom_call.1} parent=5 // pred_region
        %s398 = ssub.s32 %s14, 2
        // Predicated region
        $region49: #{tpu_custom_call.1} parent=47 // pred_check
          %p399 = pneg %p153
        $region50: #{tpu_custom_call.1} parent=47 // pred_check_branch
          %401 = sbr.rel (%p399) target = $region52
        $region51: #{tpu_custom_call.1} parent=47 // pred_region
          %s402 = sand.u32 %s138, 1
          %s403 = scalar_lea.sflag [#allocation3], %s402
          %s404 = sand.u32 %s138, 1
          %s405 = smul.addr %s404, 8
          %s406 = scalar_lea.vmem [#allocation2], %s405
          %408 = dma.done %s403, 128
        $region52: #{tpu_custom_call.1} parent=47 // pred_fallthru
          _
      $region48: #{tpu_custom_call.1} parent=5 // pred_fallthru
        _
    $region6: #{tpu_custom_call.1} parent=1 // loop_footer
      %s18 = sadd.s32 1, %s14
    $region7: #{tpu_custom_call.1} parent=1 // loop_footer_branch
      %13 = sbr.rel target = $region3
    $region8: #{tpu_custom_call.1} parent=1 // loop_exit
      _
    %409 = vsyncpa [#allocation3], 1
    %s410 = scalar_lea.sflag [#allocation3], 1
    %411 = vsyncpa %s410, 1

</llo_original>
